<compile_context>
chip_gen: v5e
topology: v5e:2x2
jax: 0.10.0
libtpu: 0.0.40
codegen_flags: <defaults>
</compile_context>

<pallas_src>
import math

import jax
import jax.numpy as jnp
from jax import lax
from jax.experimental import pallas as pl
from jax.experimental.pallas import tpu as pltpu


def _ffn_kernel(x_ref, w1_ref, b1_ref, w2_ref, b2_ref, g_ref, beta_ref, o_ref):
    # x tile kept in f32 for the residual / LayerNorm; MXU inputs in bf16.
    x_f32 = x_ref[...].astype(jnp.float32)
    x_bf16 = x_f32.astype(jnp.bfloat16)

    # fc1: (tm, E) @ (E, H) + b1   (bf16 MXU inputs, f32 accumulation)
    h = jnp.dot(x_bf16, w1_ref[...], preferred_element_type=jnp.float32)
    h = h + b1_ref[...]

    # exact GELU (erf-based, matches nn.GELU() default), in f32
    h = 0.5 * h * (1.0 + lax.erf(h * jnp.float32(1.0 / math.sqrt(2.0))))

    # dropout -> identity (eval mode)

    # fc2: (tm, H) @ (H, E) + b2   (bf16 MXU inputs, f32 accumulation)
    y = jnp.dot(h.astype(jnp.bfloat16), w2_ref[...],
                preferred_element_type=jnp.float32)
    y = y + b2_ref[...]

    # residual
    z = x_f32 + y

    # LayerNorm over embed dim (biased variance, eps = 1e-5, PyTorch default)
    mean = jnp.mean(z, axis=-1, keepdims=True)
    zc = z - mean
    var = jnp.mean(zc * zc, axis=-1, keepdims=True)
    zn = zc * lax.rsqrt(var + 1e-5)
    out = zn * g_ref[...] + beta_ref[...]

    o_ref[...] = out.astype(o_ref.dtype)


def _round_up(x, m):
    return (x + m - 1) // m * m


def feed_forward_pallas(x, w1, b1, w2, b2, gamma, beta, *, tm=256):
    """x: (B, S, E). Returns (B, S, E). Weights are f32/any-float, cast to bf16."""
    B, S, E = x.shape
    H = w1.shape[1]
    M = B * S

    # Row tile: as large as the problem allows (multiple of 8; 256-aligned by
    # default for the v6e/v7x MXU). Pad M so every tile is full -> no masked
    # stores and no ragged last block.
    tm_eff = max(8, min(tm, _round_up(M, 8)))
    M_pad = _round_up(M, tm_eff)

    x2 = x.reshape(M, E)
    if M_pad != M:
        x2 = jnp.pad(x2, ((0, M_pad - M), (0, 0)))

    # bf16 weights for the MXU (f32 accumulation happens in-kernel).
    w1_bf = w1.astype(jnp.bfloat16)
    w2_bf = w2.astype(jnp.bfloat16)
    # Biases / LN params as (1, dim) f32 so they live as 2-D VMEM tiles.
    b1_2 = b1.reshape(1, H).astype(jnp.float32)
    b2_2 = b2.reshape(1, E).astype(jnp.float32)
    g_2 = gamma.reshape(1, E).astype(jnp.float32)
    be_2 = beta.reshape(1, E).astype(jnp.float32)

    grid = (M_pad // tm_eff,)

    # Constant-index operands never change across the grid: single-buffer them.
    const_buf = pl.Buffered(1)

    # Explicit VMEM budget: double-buffered x/out tiles + single-buffered bf16
    # weights + params, with headroom. Clamped to stay inside v7x's 64 MiB VMEM.
    out_itemsize = jnp.dtype(x.dtype).itemsize
    vmem_bytes = (
        2 * tm_eff * E * x2.dtype.itemsize      # x tile, double-buffered
        + 2 * tm_eff * E * out_itemsize         # out tile, double-buffered
        + (E * H + H * E) * 2                   # bf16 W1 + W2, single-buffered
        + (H + 3 * E) * 4                       # b1, b2, gamma, beta
    )
    vmem_limit = int(min(max(int(vmem_bytes * 1.5) + (4 << 20), 16 << 20), 64 << 20))

    out2 = pl.pallas_call(
        _ffn_kernel,
        out_shape=jax.ShapeDtypeStruct((M_pad, E), x.dtype),
        grid_spec=pltpu.PrefetchScalarGridSpec(
            num_scalar_prefetch=0,
            grid=grid,
            in_specs=[
                pl.BlockSpec((tm_eff, E), lambda i: (i, 0)),                      # x rows
                pl.BlockSpec((E, H), lambda i: (0, 0), pipeline_mode=const_buf),  # W1 (bf16)
                pl.BlockSpec((1, H), lambda i: (0, 0), pipeline_mode=const_buf),  # b1
                pl.BlockSpec((H, E), lambda i: (0, 0), pipeline_mode=const_buf),  # W2 (bf16)
                pl.BlockSpec((1, E), lambda i: (0, 0), pipeline_mode=const_buf),  # b2
                pl.BlockSpec((1, E), lambda i: (0, 0), pipeline_mode=const_buf),  # ln gamma
                pl.BlockSpec((1, E), lambda i: (0, 0), pipeline_mode=const_buf),  # ln beta
            ],
            out_specs=pl.BlockSpec((tm_eff, E), lambda i: (i, 0)),
        ),
        compiler_params=pltpu.CompilerParams(
            dimension_semantics=("parallel",),
            vmem_limit_bytes=vmem_limit,
        ),
    )(x2, w1_bf, b1_2, w2_bf, b2_2, g_2, be_2)

    if M_pad != M:
        out2 = out2[:M]
    return out2.reshape(B, S, E)


def feed_forward_ref(x, w1, b1, w2, b2, gamma, beta):
    """Pure-JAX f32 reference mirroring the PyTorch forward (eval mode)."""
    residual = x
    h = x @ w1 + b1
    h = 0.5 * h * (1.0 + lax.erf(h / jnp.sqrt(2.0)))
    y = h @ w2 + b2
    z = residual + y
    mean = jnp.mean(z, axis=-1, keepdims=True)
    var = jnp.mean((z - mean) ** 2, axis=-1, keepdims=True)
    zn = (z - mean) * lax.rsqrt(var + 1e-5)
    return zn * gamma + beta


if __name__ == "__main__":
    # Small but lane-dense shapes (E, H multiples of 128) consistent with the module.
    B, S, E, H = 2, 8, 128, 256

    key = jax.random.PRNGKey(0)
    kx, k1, k2, k3, k4 = jax.random.split(key, 5)

    x = jax.random.normal(kx, (B, S, E), dtype=jnp.float32)

    # Deterministic param init (uniform like nn.Linear's default range).
    lim1 = 1.0 / jnp.sqrt(E)
    lim2 = 1.0 / jnp.sqrt(H)
    w1 = jax.random.uniform(k1, (E, H), minval=-lim1, maxval=lim1, dtype=jnp.float32)
    b1 = jax.random.uniform(k2, (H,), minval=-lim1, maxval=lim1, dtype=jnp.float32)
    w2 = jax.random.uniform(k3, (H, E), minval=-lim2, maxval=lim2, dtype=jnp.float32)
    b2 = jax.random.uniform(k4, (E,), minval=-lim2, maxval=lim2, dtype=jnp.float32)
    gamma = jnp.ones((E,), dtype=jnp.float32)   # nn.LayerNorm default weight
    beta = jnp.zeros((E,), dtype=jnp.float32)   # nn.LayerNorm default bias

    out = feed_forward_pallas(x, w1, b1, w2, b2, gamma, beta)
    out = jax.block_until_ready(out)

    ref = feed_forward_ref(x, w1, b1, w2, b2, gamma, beta)
    # bf16 MXU inputs with f32 accumulation -> compare against f32 ref with a
    # tolerance that comfortably covers bf16 rounding of the matmul inputs.
    assert out.shape == ref.shape
    assert bool(jnp.all(jnp.isfinite(out))), "non-finite output"
    assert jnp.allclose(out, ref, atol=2e-2, rtol=2e-2), "mismatch vs reference"

    print("KERNEL_OK")
</pallas_src>

<mosaic_0001>
module attributes {stable_mosaic.version = 11 : i64} {
  func.func @_ffn_kernel(%arg0: i32, %arg1: memref<16x128xf32, #tpu.memory_space<vmem>>, %arg2: memref<128x256xbf16, #tpu.memory_space<vmem>>, %arg3: memref<1x256xf32, #tpu.memory_space<vmem>>, %arg4: memref<256x128xbf16, #tpu.memory_space<vmem>>, %arg5: memref<1x128xf32, #tpu.memory_space<vmem>>, %arg6: memref<1x128xf32, #tpu.memory_space<vmem>>, %arg7: memref<1x128xf32, #tpu.memory_space<vmem>>, %arg8: memref<16x128xf32, #tpu.memory_space<vmem>>) attributes {dimension_semantics = [#tpu.dimension_semantics<parallel>], iteration_bounds = array<i64: 1>, scalar_prefetch = 0 : i64, scratch_operands = 0 : i64, tpu.core_type = #tpu.core_type<tc>, window_params = [{transform_indices = @transform_0, window_bounds = array<i64: 16, 128>}, {pipeline_mode = #tpu.pipeline_mode<synchronous>, transform_indices = @transform_1, window_bounds = array<i64: 128, 256>}, {pipeline_mode = #tpu.pipeline_mode<synchronous>, transform_indices = @transform_2, window_bounds = array<i64: 1, 256>}, {pipeline_mode = #tpu.pipeline_mode<synchronous>, transform_indices = @transform_3, window_bounds = array<i64: 256, 128>}, {pipeline_mode = #tpu.pipeline_mode<synchronous>, transform_indices = @transform_4, window_bounds = array<i64: 1, 128>}, {pipeline_mode = #tpu.pipeline_mode<synchronous>, transform_indices = @transform_5, window_bounds = array<i64: 1, 128>}, {pipeline_mode = #tpu.pipeline_mode<synchronous>, transform_indices = @transform_6, window_bounds = array<i64: 1, 128>}, {transform_indices = @transform_7, window_bounds = array<i64: 16, 128>}]} {
    %c0 = arith.constant 0 : index
    %c0_0 = arith.constant 0 : index
    %0 = vector.load %arg1[%c0, %c0_0] : memref<16x128xf32, #tpu.memory_space<vmem>>, vector<16x128xf32>
    %1 = arith.truncf %0 : vector<16x128xf32> to vector<16x128xbf16>
    %c0_1 = arith.constant 0 : index
    %c0_2 = arith.constant 0 : index
    %2 = vector.load %arg2[%c0_1, %c0_2] : memref<128x256xbf16, #tpu.memory_space<vmem>>, vector<128x256xbf16>
    %cst = arith.constant dense<0.000000e+00> : vector<16x256xf32>
    %3 = tpu.matmul %1, %2, %cst {dimension_numbers = #tpu.dot_dimension_numbers<[1], [0], [0], [1], [0, 0, 1, 1], [], []>} : vector<16x128xbf16>, vector<128x256xbf16>, vector<16x256xf32> -> vector<16x256xf32>
    %c0_3 = arith.constant 0 : index
    %c0_4 = arith.constant 0 : index
    %4 = vector.load %arg3[%c0_3, %c0_4] : memref<1x256xf32, #tpu.memory_space<vmem>>, vector<1x256xf32>
    %5 = vector.broadcast %4 : vector<1x256xf32> to vector<16x256xf32>
    %6 = arith.addf %3, %5 : vector<16x256xf32>
    %cst_5 = arith.constant 5.000000e-01 : f32
    %7 = vector.broadcast %cst_5 : f32 to vector<16x256xf32>
    %8 = arith.mulf %7, %6 : vector<16x256xf32>
    %cst_6 = arith.constant 0.707106769 : f32
    %9 = vector.broadcast %cst_6 : f32 to vector<16x256xf32>
    %10 = arith.mulf %6, %9 : vector<16x256xf32>
    %11 = math.erf %10 : vector<16x256xf32>
    %cst_7 = arith.constant 1.000000e+00 : f32
    %12 = vector.broadcast %cst_7 : f32 to vector<16x256xf32>
    %13 = arith.addf %12, %11 : vector<16x256xf32>
    %14 = arith.mulf %8, %13 : vector<16x256xf32>
    %15 = arith.truncf %14 : vector<16x256xf32> to vector<16x256xbf16>
    %c0_8 = arith.constant 0 : index
    %c0_9 = arith.constant 0 : index
    %16 = vector.load %arg4[%c0_8, %c0_9] : memref<256x128xbf16, #tpu.memory_space<vmem>>, vector<256x128xbf16>
    %cst_10 = arith.constant dense<0.000000e+00> : vector<16x128xf32>
    %17 = tpu.matmul %15, %16, %cst_10 {dimension_numbers = #tpu.dot_dimension_numbers<[1], [0], [0], [1], [0, 0, 1, 1], [], []>} : vector<16x256xbf16>, vector<256x128xbf16>, vector<16x128xf32> -> vector<16x128xf32>
    %c0_11 = arith.constant 0 : index
    %c0_12 = arith.constant 0 : index
    %18 = vector.load %arg5[%c0_11, %c0_12] : memref<1x128xf32, #tpu.memory_space<vmem>>, vector<1x128xf32>
    %19 = vector.broadcast %18 : vector<1x128xf32> to vector<16x128xf32>
    %20 = arith.addf %17, %19 : vector<16x128xf32>
    %21 = arith.addf %0, %20 : vector<16x128xf32>
    %cst_13 = arith.constant dense<0.000000e+00> : vector<16xf32>
    %22 = vector.multi_reduction <add>, %21, %cst_13 [1] : vector<16x128xf32> to vector<16xf32>
    %23 = vector.shape_cast %22 : vector<16xf32> to vector<16x1xf32>
    %cst_14 = arith.constant 1.280000e+02 : f32
    %24 = vector.broadcast %cst_14 : f32 to vector<16x1xf32>
    %25 = arith.divf %23, %24 : vector<16x1xf32>
    %26 = vector.broadcast %25 : vector<16x1xf32> to vector<16x128xf32>
    %27 = arith.subf %21, %26 : vector<16x128xf32>
    %28 = arith.mulf %27, %27 : vector<16x128xf32>
    %cst_15 = arith.constant dense<0.000000e+00> : vector<16xf32>
    %29 = vector.multi_reduction <add>, %28, %cst_15 [1] : vector<16x128xf32> to vector<16xf32>
    %30 = vector.shape_cast %29 : vector<16xf32> to vector<16x1xf32>
    %cst_16 = arith.constant 1.280000e+02 : f32
    %31 = vector.broadcast %cst_16 : f32 to vector<16x1xf32>
    %32 = arith.divf %30, %31 : vector<16x1xf32>
    %cst_17 = arith.constant 9.99999974E-6 : f32
    %33 = vector.broadcast %cst_17 : f32 to vector<16x1xf32>
    %34 = arith.addf %32, %33 : vector<16x1xf32>
    %35 = math.rsqrt %34 : vector<16x1xf32>
    %36 = vector.broadcast %35 : vector<16x1xf32> to vector<16x128xf32>
    %37 = arith.mulf %27, %36 : vector<16x128xf32>
    %c0_18 = arith.constant 0 : index
    %c0_19 = arith.constant 0 : index
    %38 = vector.load %arg6[%c0_18, %c0_19] : memref<1x128xf32, #tpu.memory_space<vmem>>, vector<1x128xf32>
    %39 = vector.broadcast %38 : vector<1x128xf32> to vector<16x128xf32>
    %40 = arith.mulf %37, %39 : vector<16x128xf32>
    %c0_20 = arith.constant 0 : index
    %c0_21 = arith.constant 0 : index
    %41 = vector.load %arg7[%c0_20, %c0_21] : memref<1x128xf32, #tpu.memory_space<vmem>>, vector<1x128xf32>
    %42 = vector.broadcast %41 : vector<1x128xf32> to vector<16x128xf32>
    %43 = arith.addf %40, %42 : vector<16x128xf32>
    %c0_22 = arith.constant 0 : index
    %c0_23 = arith.constant 0 : index
    %44 = vector.load %arg8[%c0_22, %c0_23] : memref<16x128xf32, #tpu.memory_space<vmem>>, vector<16x128xf32>
    tpu.vector_store %arg8[%c0_22, %c0_23], %43 {strides = array<i32>} : memref<16x128xf32, #tpu.memory_space<vmem>>, vector<16x128xf32>,
    return
  }
  func.func @transform_0(%arg0: i32) -> (i32, i32) {
    %c0_i32 = arith.constant 0 : i32
    %c0_i32_0 = arith.constant 0 : i32
    return %arg0, %c0_i32 : i32, i32
  }
  func.func @transform_1(%arg0: i32) -> (i32, i32) {
    %c0_i32 = arith.constant 0 : i32
    %c0_i32_0 = arith.constant 0 : i32
    %c0_i32_1 = arith.constant 0 : i32
    return %c0_i32, %c0_i32_0 : i32, i32
  }
  func.func @transform_2(%arg0: i32) -> (i32, i32) {
    %c0_i32 = arith.constant 0 : i32
    %c0_i32_0 = arith.constant 0 : i32
    %c0_i32_1 = arith.constant 0 : i32
    return %c0_i32, %c0_i32_0 : i32, i32
  }
  func.func @transform_3(%arg0: i32) -> (i32, i32) {
    %c0_i32 = arith.constant 0 : i32
    %c0_i32_0 = arith.constant 0 : i32
    %c0_i32_1 = arith.constant 0 : i32
    return %c0_i32, %c0_i32_0 : i32, i32
  }
  func.func @transform_4(%arg0: i32) -> (i32, i32) {
    %c0_i32 = arith.constant 0 : i32
    %c0_i32_0 = arith.constant 0 : i32
    %c0_i32_1 = arith.constant 0 : i32
    return %c0_i32, %c0_i32_0 : i32, i32
  }
  func.func @transform_5(%arg0: i32) -> (i32, i32) {
    %c0_i32 = arith.constant 0 : i32
    %c0_i32_0 = arith.constant 0 : i32
    %c0_i32_1 = arith.constant 0 : i32
    return %c0_i32, %c0_i32_0 : i32, i32
  }
  func.func @transform_6(%arg0: i32) -> (i32, i32) {
    %c0_i32 = arith.constant 0 : i32
    %c0_i32_0 = arith.constant 0 : i32
    %c0_i32_1 = arith.constant 0 : i32
    return %c0_i32, %c0_i32_0 : i32, i32
  }
  func.func @transform_7(%arg0: i32) -> (i32, i32) {
    %c0_i32 = arith.constant 0 : i32
    %c0_i32_0 = arith.constant 0 : i32
    return %arg0, %c0_i32 : i32, i32
  }
}

</mosaic_0001>

<llo_original>
// kernel: tpu_custom_call.1
$region0: #{tpu_custom_call.1}
  #allocation0 [shape = 'u32[]', space=smem, size = 0x4, offset = 0x4, fixed_abs, tag = 'smem constant byte address 0x4 - core index']
  #allocation1 [shape = 'u32[72,128]{1,0:T(1,128)}', space=vmem, size = 0x9000, scoped, tag = 'internal scratch']
  %s0 = inlined_call_operand.hbm [shape: f32[16,128], index: 0, kind: input, shape index: {}]
  %s1 = inlined_call_operand.hbm [shape: bf16[128,256], index: 1, kind: input, shape index: {}]
  %s2 = inlined_call_operand.hbm [shape: f32[1,256], index: 2, kind: input, shape index: {}]
  %s3 = inlined_call_operand.hbm [shape: bf16[256,128], index: 3, kind: input, shape index: {}]
  %s4 = inlined_call_operand.vmem [shape: f32[1,128], index: 4, kind: input, shape index: {}]
  %s5 = inlined_call_operand.vmem [shape: f32[1,128], index: 5, kind: input, shape index: {}]
  %s6 = inlined_call_operand.vmem [shape: f32[1,128], index: 6, kind: input, shape index: {}]
  %s7 = inlined_call_operand.hbm [shape: f32[16,128], index: 7, kind: output, shape index: {}]
  %s8 = sld [smem:[#allocation0]]
  $region54: #{tpu_custom_call.1} parent=0
    _
  %s10 = ssub.s32 1, %s8
  %s11 = scalar_select 0, %s10, %s8
  $region1: #{tpu_custom_call.1} parent=0
    #allocation2 [shape = 'u8[8192]{0}', space=vmem, size = 0x2000, scoped, tag = 'input window, operand 0, single buffered']
    #allocation3 [shape = 's32[1]{0}', space=sflag, size = 0x4, scoped, tag = 'scoped memory for tpu_custom_call.1']
    #allocation4 [shape = 's32[1]{0}', space=sflag, size = 0x4, scoped, tag = 'scoped memory for tpu_custom_call.1']
    #allocation5 [shape = 'u8[65536]{0}', space=vmem, size = 0x10000, scoped, tag = 'input window, operand 1, single buffered']
    #allocation6 [shape = 's32[1]{0}', space=sflag, size = 0x4, scoped, tag = 'scoped memory for tpu_custom_call.1']
    #allocation7 [shape = 'u8[1024]{0}', space=vmem, size = 0x400, scoped, tag = 'input window, operand 2, single buffered']
    #allocation8 [shape = 'u8[65536]{0}', space=vmem, size = 0x10000, scoped, tag = 'input window, operand 3, single buffered']
    #allocation9 [shape = 's32[1]{0}', space=sflag, size = 0x4, scoped, tag = 'scoped memory for tpu_custom_call.1']
    #allocation10 [shape = 'u8[8192]{0}', space=vmem, size = 0x2000, scoped, tag = 'output window, operand 0, single buffered']
    %12 = vsyncpa [#allocation3], 0
    %13 = vsyncpa [#allocation6], 0
    %14 = vsyncpa [#allocation9], 0
    %15 = vsyncpa [#allocation4], 0
    // Predicated region
    $region2: #{tpu_custom_call.1} parent=1 // pred_check
      _
    $region3: #{tpu_custom_call.1} parent=1 // pred_check_branch
      %17 = sbr.rel (0) target = $region5
    $region4: #{tpu_custom_call.1} parent=1 // pred_region
      %19 = vsyncadd [#allocation3], 0
      %s20 = sshll.u32 %s0, 4
      %s21 = int_to_ptr.hbm [resolvable:$true] %s20
      %s22 = sshll.u32 [#allocation2], 4
      %s23 = int_to_ptr.vmem [resolvable:$true] %s22
      %28 = dma.hbm_to_vmem [thread:$0]  %s21, 256, %s23, [#allocation3], 128, 128, 8
    $region5: #{tpu_custom_call.1} parent=1 // pred_fallthru
      _
    // Predicated region
    $region6: #{tpu_custom_call.1} parent=1 // pred_check
      _
    $region7: #{tpu_custom_call.1} parent=1 // pred_check_branch
      %30 = sbr.rel (0) target = $region9
    $region8: #{tpu_custom_call.1} parent=1 // pred_region
      %32 = vsyncadd [#allocation6], 0
      %s33 = sshll.u32 %s1, 4
      %s34 = int_to_ptr.hbm [resolvable:$true] %s33
      %s35 = sshll.u32 [#allocation5], 4
      %s36 = int_to_ptr.vmem [resolvable:$true] %s35
      %41 = dma.hbm_to_vmem [thread:$0]  %s34, 2048, %s36, [#allocation6], 128, 128, 8
    $region9: #{tpu_custom_call.1} parent=1 // pred_fallthru
      _
    // Predicated region
    $region10: #{tpu_custom_call.1} parent=1 // pred_check
      _
    $region11: #{tpu_custom_call.1} parent=1 // pred_check_branch
      %43 = sbr.rel (0) target = $region13
    $region12: #{tpu_custom_call.1} parent=1 // pred_region
      %45 = vsyncadd [#allocation6], 0
      %s47 = sshll.u32 %s2, 4
      %s48 = int_to_ptr.hbm [resolvable:$true] %s47
      %s49 = sshll.u32 [#allocation7], 4
      %s50 = int_to_ptr.vmem [resolvable:$true] %s49
      %52 = dma.hbm_to_vmem [thread:$0]  %s48, 32, %s50, [#allocation6]
    $region13: #{tpu_custom_call.1} parent=1 // pred_fallthru
      _
    // Predicated region
    $region14: #{tpu_custom_call.1} parent=1 // pred_check
      _
    $region15: #{tpu_custom_call.1} parent=1 // pred_check_branch
      %54 = sbr.rel (0) target = $region17
    $region16: #{tpu_custom_call.1} parent=1 // pred_region
      %56 = vsyncadd [#allocation9], 0
      %s57 = sshll.u32 %s3, 4
      %s58 = int_to_ptr.hbm [resolvable:$true] %s57
      %s59 = sshll.u32 [#allocation8], 4
      %s60 = int_to_ptr.vmem [resolvable:$true] %s59
      %65 = dma.hbm_to_vmem [thread:$0]  %s58, 2048, %s60, [#allocation9], 64, 64, 4
    $region17: #{tpu_custom_call.1} parent=1 // pred_fallthru
      _
    // Predicated region
    $region18: #{tpu_custom_call.1} parent=1 // pred_check
      _
    $region19: #{tpu_custom_call.1} parent=1 // pred_check_branch
      %67 = sbr.rel (0) target = $region21
    $region20: #{tpu_custom_call.1} parent=1 // pred_region
      _
    $region21: #{tpu_custom_call.1} parent=1 // pred_fallthru
      _
    // Predicated region
    $region22: #{tpu_custom_call.1} parent=1 // pred_check
      _
    $region23: #{tpu_custom_call.1} parent=1 // pred_check_branch
      %69 = sbr.rel (0) target = $region25
    $region24: #{tpu_custom_call.1} parent=1 // pred_region
      _
    $region25: #{tpu_custom_call.1} parent=1 // pred_fallthru
      _
    // Predicated region
    $region26: #{tpu_custom_call.1} parent=1 // pred_check
      _
    $region27: #{tpu_custom_call.1} parent=1 // pred_check_branch
      %71 = sbr.rel (0) target = $region29
    $region28: #{tpu_custom_call.1} parent=1 // pred_region
      _
    $region29: #{tpu_custom_call.1} parent=1 // pred_fallthru
      _
    // Predicated region
    $region30: #{tpu_custom_call.1} parent=1 // pred_check
      _
    $region31: #{tpu_custom_call.1} parent=1 // pred_check_branch
      %73 = sbr.rel (0) target = $region33
    $region32: #{tpu_custom_call.1} parent=1 // pred_region
      %75 = dma.done [#allocation3], 256
    $region33: #{tpu_custom_call.1} parent=1 // pred_fallthru
      _
    // Predicated region
    $region34: #{tpu_custom_call.1} parent=1 // pred_check
      _
    $region35: #{tpu_custom_call.1} parent=1 // pred_check_branch
      %77 = sbr.rel (0) target = $region37
    $region36: #{tpu_custom_call.1} parent=1 // pred_region
      %79 = dma.done [#allocation6], 2048
    $region37: #{tpu_custom_call.1} parent=1 // pred_fallthru
      _
    // Predicated region
    $region38: #{tpu_custom_call.1} parent=1 // pred_check
      _
    $region39: #{tpu_custom_call.1} parent=1 // pred_check_branch
      %81 = sbr.rel (0) target = $region41
    $region40: #{tpu_custom_call.1} parent=1 // pred_region
      %83 = dma.done [#allocation6], 32
    $region41: #{tpu_custom_call.1} parent=1 // pred_fallthru
      _
    // Predicated region
    $region42: #{tpu_custom_call.1} parent=1 // pred_check
      _
    $region43: #{tpu_custom_call.1} parent=1 // pred_check_branch
      %85 = sbr.rel (0) target = $region45
    $region44: #{tpu_custom_call.1} parent=1 // pred_region
      %87 = dma.done [#allocation9], 2048
    $region45: #{tpu_custom_call.1} parent=1 // pred_fallthru
      _
    %v88 = vld [vmem:[#allocation2] sm:$0xff]
    %v89 = vld [vmem:[#allocation2 + $0x8] sm:$0xff]
    %v90 = vpack.c.bf16 %v89, %v88
    %v91 = vld [vmem:[#allocation5] sm:$0xff]
    %v92 = vld [vmem:[#allocation5 + $0x8] sm:$0xff]
    %v93 = vld [vmem:[#allocation5 + $0x10] sm:$0xff]
    %v94 = vld [vmem:[#allocation5 + $0x18] sm:$0xff]
    %v95 = vld [vmem:[#allocation5 + $0x20] sm:$0xff]
    %v96 = vld [vmem:[#allocation5 + $0x28] sm:$0xff]
    %v97 = vld [vmem:[#allocation5 + $0x30] sm:$0xff]
    %v98 = vld [vmem:[#allocation5 + $0x38] sm:$0xff]
    %v99 = vld [vmem:[#allocation5 + $0x40] sm:$0xff]
    %v100 = vld [vmem:[#allocation5 + $0x48] sm:$0xff]
    %v101 = vld [vmem:[#allocation5 + $0x50] sm:$0xff]
    %v102 = vld [vmem:[#allocation5 + $0x58] sm:$0xff]
    %v103 = vld [vmem:[#allocation5 + $0x60] sm:$0xff]
    %v104 = vld [vmem:[#allocation5 + $0x68] sm:$0xff]
    %v105 = vld [vmem:[#allocation5 + $0x70] sm:$0xff]
    %v106 = vld [vmem:[#allocation5 + $0x78] sm:$0xff]
    %v107 = vld [vmem:[#allocation7] sm:$0x3]
    %v109 = vperm.slane %v107, 0
    %v110 = vperm.slane %v107, 1
    %v129 = vunpack.c.l.b16 %v91
    %v130 = vunpack.c.h.b16 %v91
    %v131 = vunpack.c.l.b16 %v92
    %v132 = vunpack.c.h.b16 %v92
    %v133 = vunpack.c.l.b16 %v93
    %v134 = vunpack.c.h.b16 %v93
    %v135 = vunpack.c.l.b16 %v94
    %v136 = vunpack.c.h.b16 %v94
    %v137 = vunpack.c.l.b16 %v95
    %v138 = vunpack.c.h.b16 %v95
    %v139 = vunpack.c.l.b16 %v96
    %v140 = vunpack.c.h.b16 %v96
    %v141 = vunpack.c.l.b16 %v97
    %v142 = vunpack.c.h.b16 %v97
    %v143 = vunpack.c.l.b16 %v98
    %v144 = vunpack.c.h.b16 %v98
    %v145 = vunpack.c.l.b16 %v99
    %v146 = vunpack.c.h.b16 %v99
    %v147 = vunpack.c.l.b16 %v100
    %v148 = vunpack.c.h.b16 %v100
    %v149 = vunpack.c.l.b16 %v101
    %v150 = vunpack.c.h.b16 %v101
    %v151 = vunpack.c.l.b16 %v102
    %v152 = vunpack.c.h.b16 %v102
    %v153 = vunpack.c.l.b16 %v103
    %v154 = vunpack.c.h.b16 %v103
    %v155 = vunpack.c.l.b16 %v104
    %v156 = vunpack.c.h.b16 %v104
    %v157 = vunpack.c.l.b16 %v105
    %v158 = vunpack.c.h.b16 %v105
    %v159 = vunpack.c.l.b16 %v106
    %v160 = vunpack.c.h.b16 %v106
    %v161 = vpack.c.b16 %v131, %v129
    %v162 = vpack.c.b16 %v132, %v130
    %v163 = vpack.c.b16 %v135, %v133
    %v164 = vpack.c.b16 %v136, %v134
    %v165 = vpack.c.b16 %v139, %v137
    %v166 = vpack.c.b16 %v140, %v138
    %v167 = vpack.c.b16 %v143, %v141
    %v168 = vpack.c.b16 %v144, %v142
    %v169 = vpack.c.b16 %v147, %v145
    %v170 = vpack.c.b16 %v148, %v146
    %v171 = vpack.c.b16 %v151, %v149
    %v172 = vpack.c.b16 %v152, %v150
    %v173 = vpack.c.b16 %v155, %v153
    %v174 = vpack.c.b16 %v156, %v154
    %v175 = vpack.c.b16 %v159, %v157
    %v176 = vpack.c.b16 %v160, %v158
    %193 = vmatpush.bf16.msra.mxu0 %v175
    %194 = vmatpush.bf16.msra.mxu0 %v173
    %195 = vmatpush.bf16.msra.mxu0 %v171
    %196 = vmatpush.bf16.msra.mxu0 %v169
    %197 = vmatpush.bf16.msra.mxu0 %v167
    %198 = vmatpush.bf16.msra.mxu0 %v165
    %199 = vmatpush.bf16.msra.mxu0 %v163
    %200 = vmatpush.bf16.msra.mxu0 %v161
    %201 = vmatmul.bf16.gmra.mxu0 %v90
    %v202 = vpop.f32.mrf.mxu0
    %v203 = vadd.f32 %v109, %v202
    %v204 = vpop.f32.mrf.mxu0
    %v205 = vadd.f32 %v109, %v204
    %206 = vdwg.mxu0
    %207 = vmatpush.bf16.msra.mxu0 %v176
    %208 = vmatpush.bf16.msra.mxu0 %v174
    %209 = vmatpush.bf16.msra.mxu0 %v172
    %210 = vmatpush.bf16.msra.mxu0 %v170
    %211 = vmatpush.bf16.msra.mxu0 %v168
    %212 = vmatpush.bf16.msra.mxu0 %v166
    %213 = vmatpush.bf16.msra.mxu0 %v164
    %214 = vmatpush.bf16.msra.mxu0 %v162
    %215 = vmatmul.bf16.gmra.mxu0 %v90
    %v216 = vpop.f32.mrf.mxu0
    %v217 = vadd.f32 %v110, %v216
    %v218 = vpop.f32.mrf.mxu0
    %v219 = vadd.f32 %v110, %v218
    %220 = vdwg.mxu0
    %v221 = vmul.f32 %v203, 0.5
    %v222 = vmul.f32 %v217, 0.5
    %v223 = vmul.f32 %v205, 0.5
    %v224 = vmul.f32 %v219, 0.5
    %v225 = vmul.f32 %v203, 0.70710677
    %v226 = vmul.f32 %v217, 0.70710677
    %v227 = vmul.f32 %v205, 0.70710677
    %v228 = vmul.f32 %v219, 0.70710677
    %v229 = vmul.f32 %v225, %v225
    %v230 = vmin.f32 16.0, %v229
    %v231 = vmul.f32 %v230, 2.1237322e-06
    %v232 = vadd.f32 %v231, 0.00028619796
    %v233 = vmul.f32 %v230, %v232
    %v234 = vadd.f32 %v233, 0.0036580483
    %v235 = vmul.f32 %v230, %v234
    %v236 = vadd.f32 %v235, 0.05243302
    %v237 = vmul.f32 %v230, %v236
    %v238 = vadd.f32 %v237, 0.18741608
    %v239 = vmul.f32 %v230, %v238
    %v240 = vadd.f32 %v239, 1.1283791
    %v241 = vmul.f32 %v225, %v240
    %v242 = vmul.f32 %v230, 3.8918573e-05
    %v243 = vadd.f32 %v242, 0.001143296
    %v244 = vmul.f32 %v230, %v243
    %v245 = vadd.f32 %v244, 0.014752088
    %v246 = vmul.f32 %v230, %v245
    %v247 = vadd.f32 %v246, 0.112945676
    %v248 = vmul.f32 %v230, %v247
    %v249 = vadd.f32 %v248, 0.4994258
    %v250 = vmul.f32 %v230, %v249
    %v251 = vadd.f32 %v250, 1.0
    %v252 = vrcp.pop %v251
    %v253 = vmul.f32 %v251, %v252
    %v254 = vsub.f32 1.0, %v253
    %v255 = vmul.f32 %v252, %v254
    %v256 = vadd.f32 %v252, %v255
    %vm257 = vweird.f32 %v251
    %vm258 = vweird.f32 %v252
    %vm259 = vmor %vm257, %vm258
    %v260 = vsel %vm259, %v252, %v256
    %v261 = vand.u32 2147483647, %v251
    %vm262 = vcmp.eq.f32.partialorder %v261, 8.507059e+37
    %v263 = vand.u32 %v251, 2147483648
    %v264 = vor.u32 1.1754944e-38, %v263
    %v265 = vsel %vm262, %v264, %v260
    %v266 = vmul.f32 %v241, %v265
    %v267 = vmin.f32 %v266, 1.0
    %v268 = vmax.f32 %v267, -1.0
    %v269 = vmul.f32 %v226, %v226
    %v270 = vmin.f32 16.0, %v269
    %v271 = vmul.f32 %v270, 2.1237322e-06
    %v272 = vadd.f32 %v271, 0.00028619796
    %v273 = vmul.f32 %v270, %v272
    %v274 = vadd.f32 %v273, 0.0036580483
    %v275 = vmul.f32 %v270, %v274
    %v276 = vadd.f32 %v275, 0.05243302
    %v277 = vmul.f32 %v270, %v276
    %v278 = vadd.f32 %v277, 0.18741608
    %v279 = vmul.f32 %v270, %v278
    %v280 = vadd.f32 %v279, 1.1283791
    %v281 = vmul.f32 %v226, %v280
    %v282 = vmul.f32 %v270, 3.8918573e-05
    %v283 = vadd.f32 %v282, 0.001143296
    %v284 = vmul.f32 %v270, %v283
    %v285 = vadd.f32 %v284, 0.014752088
    %v286 = vmul.f32 %v270, %v285
    %v287 = vadd.f32 %v286, 0.112945676
    %v288 = vmul.f32 %v270, %v287
    %v289 = vadd.f32 %v288, 0.4994258
    %v290 = vmul.f32 %v270, %v289
    %v291 = vadd.f32 %v290, 1.0
    %v292 = vrcp.pop %v291
    %v293 = vmul.f32 %v291, %v292
    %v294 = vsub.f32 1.0, %v293
    %v295 = vmul.f32 %v292, %v294
    %v296 = vadd.f32 %v292, %v295
    %vm297 = vweird.f32 %v291
    %vm298 = vweird.f32 %v292
    %vm299 = vmor %vm297, %vm298
    %v300 = vsel %vm299, %v292, %v296
    %v301 = vand.u32 2147483647, %v291
    %vm302 = vcmp.eq.f32.partialorder %v301, 8.507059e+37
    %v303 = vand.u32 %v291, 2147483648
    %v304 = vor.u32 1.1754944e-38, %v303
    %v305 = vsel %vm302, %v304, %v300
    %v306 = vmul.f32 %v281, %v305
    %v307 = vmin.f32 %v306, 1.0
    %v308 = vmax.f32 %v307, -1.0
    %v309 = vmul.f32 %v227, %v227
    %v310 = vmin.f32 16.0, %v309
    %v311 = vmul.f32 %v310, 2.1237322e-06
    %v312 = vadd.f32 %v311, 0.00028619796
    %v313 = vmul.f32 %v310, %v312
    %v314 = vadd.f32 %v313, 0.0036580483
    %v315 = vmul.f32 %v310, %v314
    %v316 = vadd.f32 %v315, 0.05243302
    %v317 = vmul.f32 %v310, %v316
    %v318 = vadd.f32 %v317, 0.18741608
    %v319 = vmul.f32 %v310, %v318
    %v320 = vadd.f32 %v319, 1.1283791
    %v321 = vmul.f32 %v227, %v320
    %v322 = vmul.f32 %v310, 3.8918573e-05
    %v323 = vadd.f32 %v322, 0.001143296
    %v324 = vmul.f32 %v310, %v323
    %v325 = vadd.f32 %v324, 0.014752088
    %v326 = vmul.f32 %v310, %v325
    %v327 = vadd.f32 %v326, 0.112945676
    %v328 = vmul.f32 %v310, %v327
    %v329 = vadd.f32 %v328, 0.4994258
    %v330 = vmul.f32 %v310, %v329
    %v331 = vadd.f32 %v330, 1.0
    %v332 = vrcp.pop %v331
    %v333 = vmul.f32 %v331, %v332
    %v334 = vsub.f32 1.0, %v333
    %v335 = vmul.f32 %v332, %v334
    %v336 = vadd.f32 %v332, %v335
    %vm337 = vweird.f32 %v331
    %vm338 = vweird.f32 %v332
    %vm339 = vmor %vm337, %vm338
    %v340 = vsel %vm339, %v332, %v336
    %v341 = vand.u32 2147483647, %v331
    %vm342 = vcmp.eq.f32.partialorder %v341, 8.507059e+37
    %v343 = vand.u32 %v331, 2147483648
    %v344 = vor.u32 1.1754944e-38, %v343
    %v345 = vsel %vm342, %v344, %v340
    %v346 = vmul.f32 %v321, %v345
    %v347 = vmin.f32 %v346, 1.0
    %v348 = vmax.f32 %v347, -1.0
    %v349 = vmul.f32 %v228, %v228
    %v350 = vmin.f32 16.0, %v349
    %v351 = vmul.f32 %v350, 2.1237322e-06
    %v352 = vadd.f32 %v351, 0.00028619796
    %v353 = vmul.f32 %v350, %v352
    %v354 = vadd.f32 %v353, 0.0036580483
    %v355 = vmul.f32 %v350, %v354
    %v356 = vadd.f32 %v355, 0.05243302
    %v357 = vmul.f32 %v350, %v356
    %v358 = vadd.f32 %v357, 0.18741608
    %v359 = vmul.f32 %v350, %v358
    %v360 = vadd.f32 %v359, 1.1283791
    %v361 = vmul.f32 %v228, %v360
    %v362 = vmul.f32 %v350, 3.8918573e-05
    %v363 = vadd.f32 %v362, 0.001143296
    %v364 = vmul.f32 %v350, %v363
    %v365 = vadd.f32 %v364, 0.014752088
    %v366 = vmul.f32 %v350, %v365
    %v367 = vadd.f32 %v366, 0.112945676
    %v368 = vmul.f32 %v350, %v367
    %v369 = vadd.f32 %v368, 0.4994258
    %v370 = vmul.f32 %v350, %v369
    %v371 = vadd.f32 %v370, 1.0
    %v372 = vrcp.pop %v371
    %v373 = vmul.f32 %v371, %v372
    %v374 = vsub.f32 1.0, %v373
    %v375 = vmul.f32 %v372, %v374
    %v376 = vadd.f32 %v372, %v375
    %vm377 = vweird.f32 %v371
    %vm378 = vweird.f32 %v372
    %vm379 = vmor %vm377, %vm378
    %v380 = vsel %vm379, %v372, %v376
    %v381 = vand.u32 2147483647, %v371
    %vm382 = vcmp.eq.f32.partialorder %v381, 8.507059e+37
    %v383 = vand.u32 %v371, 2147483648
    %v384 = vor.u32 1.1754944e-38, %v383
    %v385 = vsel %vm382, %v384, %v380
    %v386 = vmul.f32 %v361, %v385
    %v387 = vmin.f32 %v386, 1.0
    %v388 = vmax.f32 %v387, -1.0
    %v389 = vadd.f32 %v268, 1.0
    %v390 = vadd.f32 %v308, 1.0
    %v391 = vadd.f32 %v348, 1.0
    %v392 = vadd.f32 %v388, 1.0
    %v393 = vmul.f32 %v221, %v389
    %v394 = vmul.f32 %v222, %v390
    %v395 = vmul.f32 %v223, %v391
    %v396 = vmul.f32 %v224, %v392
    %v397 = vpack.c.bf16 %v395, %v393
    %v398 = vpack.c.bf16 %v396, %v394
    %v399 = vld [vmem:[#allocation8] sm:$0xf]
    %v400 = vld [vmem:[#allocation8 + $0x4] sm:$0xf]
    %v401 = vld [vmem:[#allocation8 + $0x8] sm:$0xf]
    %v402 = vld [vmem:[#allocation8 + $0xc] sm:$0xf]
    %v403 = vld [vmem:[#allocation8 + $0x10] sm:$0xf]
    %v404 = vld [vmem:[#allocation8 + $0x14] sm:$0xf]
    %v405 = vld [vmem:[#allocation8 + $0x18] sm:$0xf]
    %v406 = vld [vmem:[#allocation8 + $0x1c] sm:$0xf]
    %v407 = vld [vmem:[#allocation8 + $0x20] sm:$0xf]
    %v408 = vld [vmem:[#allocation8 + $0x24] sm:$0xf]
    %v409 = vld [vmem:[#allocation8 + $0x28] sm:$0xf]
    %v410 = vld [vmem:[#allocation8 + $0x2c] sm:$0xf]
    %v411 = vld [vmem:[#allocation8 + $0x30] sm:$0xf]
    %v412 = vld [vmem:[#allocation8 + $0x34] sm:$0xf]
    %v413 = vld [vmem:[#allocation8 + $0x38] sm:$0xf]
    %v414 = vld [vmem:[#allocation8 + $0x3c] sm:$0xf]
    %v415 = vld [vmem:[#allocation8 + $0x40] sm:$0xf]
    %v416 = vld [vmem:[#allocation8 + $0x44] sm:$0xf]
    %v417 = vld [vmem:[#allocation8 + $0x48] sm:$0xf]
    %v418 = vld [vmem:[#allocation8 + $0x4c] sm:$0xf]
    %v419 = vld [vmem:[#allocation8 + $0x50] sm:$0xf]
    %v420 = vld [vmem:[#allocation8 + $0x54] sm:$0xf]
    %v421 = vld [vmem:[#allocation8 + $0x58] sm:$0xf]
    %v422 = vld [vmem:[#allocation8 + $0x5c] sm:$0xf]
    %v423 = vld [vmem:[#allocation8 + $0x60] sm:$0xf]
    %v424 = vld [vmem:[#allocation8 + $0x64] sm:$0xf]
    %v425 = vld [vmem:[#allocation8 + $0x68] sm:$0xf]
    %v426 = vld [vmem:[#allocation8 + $0x6c] sm:$0xf]
    %v427 = vld [vmem:[#allocation8 + $0x70] sm:$0xf]
    %v428 = vld [vmem:[#allocation8 + $0x74] sm:$0xf]
    %v429 = vld [vmem:[#allocation8 + $0x78] sm:$0xf]
    %v430 = vld [vmem:[#allocation8 + $0x7c] sm:$0xf]
    %v431 = vld [vmem:[%s4] sm:$0x1]
    %v433 = vperm.slane %v431, 0
    %v467 = vunpack.c.l.b16 %v399
    %v468 = vunpack.c.l.b16 %v400
    %v469 = vunpack.c.l.b16 %v401
    %v470 = vunpack.c.l.b16 %v402
    %v471 = vunpack.c.l.b16 %v403
    %v472 = vunpack.c.l.b16 %v404
    %v473 = vunpack.c.l.b16 %v405
    %v474 = vunpack.c.l.b16 %v406
    %v475 = vunpack.c.l.b16 %v407
    %v476 = vunpack.c.l.b16 %v408
    %v477 = vunpack.c.l.b16 %v409
    %v478 = vunpack.c.l.b16 %v410
    %v479 = vunpack.c.l.b16 %v411
    %v480 = vunpack.c.l.b16 %v412
    %v481 = vunpack.c.l.b16 %v413
    %v482 = vunpack.c.l.b16 %v414
    %v483 = vunpack.c.l.b16 %v415
    %v484 = vunpack.c.l.b16 %v416
    %v485 = vunpack.c.l.b16 %v417
    %v486 = vunpack.c.l.b16 %v418
    %v487 = vunpack.c.l.b16 %v419
    %v488 = vunpack.c.l.b16 %v420
    %v489 = vunpack.c.l.b16 %v421
    %v490 = vunpack.c.l.b16 %v422
    %v491 = vunpack.c.l.b16 %v423
    %v492 = vunpack.c.l.b16 %v424
    %v493 = vunpack.c.l.b16 %v425
    %v494 = vunpack.c.l.b16 %v426
    %v495 = vunpack.c.l.b16 %v427
    %v496 = vunpack.c.l.b16 %v428
    %v497 = vunpack.c.l.b16 %v429
    %v498 = vunpack.c.l.b16 %v430
    %v499 = vpack.c.b16 %v468, %v467
    %v500 = vpack.c.b16 %v470, %v469
    %v501 = vpack.c.b16 %v472, %v471
    %v502 = vpack.c.b16 %v474, %v473
    %v503 = vpack.c.b16 %v476, %v475
    %v504 = vpack.c.b16 %v478, %v477
    %v505 = vpack.c.b16 %v480, %v479
    %v506 = vpack.c.b16 %v482, %v481
    %v507 = vpack.c.b16 %v484, %v483
    %v508 = vpack.c.b16 %v486, %v485
    %v509 = vpack.c.b16 %v488, %v487
    %v510 = vpack.c.b16 %v490, %v489
    %v511 = vpack.c.b16 %v492, %v491
    %v512 = vpack.c.b16 %v494, %v493
    %v513 = vpack.c.b16 %v496, %v495
    %v514 = vpack.c.b16 %v498, %v497
    %531 = vmatpush.bf16.msra.mxu0 %v506
    %532 = vmatpush.bf16.msra.mxu0 %v505
    %533 = vmatpush.bf16.msra.mxu0 %v504
    %534 = vmatpush.bf16.msra.mxu0 %v503
    %535 = vmatpush.bf16.msra.mxu0 %v502
    %536 = vmatpush.bf16.msra.mxu0 %v501
    %537 = vmatpush.bf16.msra.mxu0 %v500
    %538 = vmatpush.bf16.msra.mxu0 %v499
    %539 = vmatmul.bf16.gmra.mxu0 %v397
    %v540 = vpop.f32.mrf.mxu0
    %v541 = vadd.f32 %v433, %v540
    %v542 = vpop.f32.mrf.mxu0
    %v543 = vadd.f32 %v433, %v542
    %544 = vdwg.mxu0
    %545 = vmatpush.bf16.msra.mxu0 %v514
    %546 = vmatpush.bf16.msra.mxu0 %v513
    %547 = vmatpush.bf16.msra.mxu0 %v512
    %548 = vmatpush.bf16.msra.mxu0 %v511
    %549 = vmatpush.bf16.msra.mxu0 %v510
    %550 = vmatpush.bf16.msra.mxu0 %v509
    %551 = vmatpush.bf16.msra.mxu0 %v508
    %552 = vmatpush.bf16.msra.mxu0 %v507
    %553 = vmatmul.bf16.gmra.mxu0 %v398
    %v554 = vpop.f32.mrf.mxu0
    %v555 = vadd.f32 %v541, %v554
    %v556 = vpop.f32.mrf.mxu0
    %v557 = vadd.f32 %v543, %v556
    %558 = vdwg.mxu0
    %v559 = vadd.f32 %v88, %v555
    %v560 = vadd.f32 %v89, %v557
    %561 = vadd.xlane.f32.xlu0 %v559
    %v562 = vpop.xlane.xlu0 %561
    %563 = vadd.xlane.f32.xlu0 %v560
    %v564 = vpop.xlane.xlu0 %563
    %v565 = vrcp.pop 128.0
    %v566 = vmul.f32 128.0, %v565
    %v567 = vsub.f32 1.0, %v566
    %v568 = vmul.f32 %v565, %v567
    %v569 = vadd.f32 %v565, %v568
    %vm570 = vweird.f32 %v565
    %v571 = vsel %vm570, %v565, %v569
    %v572 = vmul.f32 %v562, %v571
    %v573 = vmul.f32 %v564, %v571
    %v574 = vsub.f32 %v559, %v572
    %v575 = vsub.f32 %v560, %v573
    %v576 = vmul.f32 %v574, %v574
    %v577 = vmul.f32 %v575, %v575
    %578 = vadd.xlane.f32.xlu0 %v576
    %v579 = vpop.xlane.xlu0 %578
    %580 = vadd.xlane.f32.xlu0 %v577
    %v581 = vpop.xlane.xlu0 %580
    %v582 = vmul.f32 %v579, %v571
    %v583 = vmul.f32 %v581, %v571
    %v584 = vadd.f32 %v582, 1e-05
    %v585 = vadd.f32 %v583, 1e-05
    %v586 = vrsqrt.pop %v584
    %v587 = vmul.f32 %v586, %v584
    %v588 = vmul.f32 %v587, %v586
    %v589 = vmul.f32 0.5, %v588
    %v590 = vsub.f32 1.5, %v589
    %v591 = vmul.f32 %v586, %v590
    %vm592 = vweird.f32 %v584
    %vm593 = vweird.f32 %v586
    %vm594 = vmor %vm592, %vm593
    %v595 = vsel %vm594, %v586, %v591
    %v596 = vrsqrt.pop %v585
    %v597 = vmul.f32 %v596, %v585
    %v598 = vmul.f32 %v597, %v596
    %v599 = vmul.f32 0.5, %v598
    %v600 = vsub.f32 1.5, %v599
    %v601 = vmul.f32 %v596, %v600
    %vm602 = vweird.f32 %v585
    %vm603 = vweird.f32 %v596
    %vm604 = vmor %vm602, %vm603
    %v605 = vsel %vm604, %v596, %v601
    %v606 = vmul.f32 %v574, %v595
    %v607 = vmul.f32 %v575, %v605
    %v608 = vld [vmem:[%s5] sm:$0x1]
    %v610 = vperm.slane %v608, 0
    %v612 = vmul.f32 %v606, %v610
    %v613 = vmul.f32 %v607, %v610
    %v614 = vld [vmem:[%s6] sm:$0x1]
    %v616 = vperm.slane %v614, 0
    %v618 = vadd.f32 %v612, %v616
    %v619 = vadd.f32 %v613, %v616
    %620 = vst [vmem:[#allocation10] sm:$0xff] %v618
    %621 = vst [vmem:[#allocation10 + $0x8] sm:$0xff] %v619
    // Predicated region
    $region46: #{tpu_custom_call.1} parent=1 // pred_check
      _
    $region47: #{tpu_custom_call.1} parent=1 // pred_check_branch
      %623 = sbr.rel (0) target = $region49
    $region48: #{tpu_custom_call.1} parent=1 // pred_region
      %625 = vsyncadd [#allocation4], 0
      %s626 = sshll.u32 [#allocation10], 4
      %s627 = int_to_ptr.vmem [resolvable:$true] %s626
      %s628 = sshll.u32 %s7, 4
      %s629 = int_to_ptr.hbm [resolvable:$true] %s628
      %634 = dma.vmem_to_hbm [thread:$0]  %s627, 256, %s629, [#allocation4], 128, 128, 8
    $region49: #{tpu_custom_call.1} parent=1 // pred_fallthru
      _
    // Predicated region
    $region50: #{tpu_custom_call.1} parent=1 // pred_check
      _
    $region51: #{tpu_custom_call.1} parent=1 // pred_check_branch
      %636 = sbr.rel (0) target = $region53
    $region52: #{tpu_custom_call.1} parent=1 // pred_region
      %638 = dma.done [#allocation4], 256
    $region53: #{tpu_custom_call.1} parent=1 // pred_fallthru
      _
    %639 = vsyncpa [#allocation3], 1
    %640 = vsyncpa [#allocation6], 1
    %641 = vsyncpa [#allocation9], 1
    %642 = vsyncpa [#allocation4], 1

</llo_original>
